<compile_context>
chip_gen: v5e
topology: v5e:2x2
jax: 0.10.0
libtpu: 0.0.40
codegen_flags: <defaults>
</compile_context>

<pallas_src>
import jax
import jax.numpy as jnp
from jax.experimental import pallas as pl
from jax.experimental.pallas import tpu as pltpu


def _cdiv(a: int, b: int) -> int:
    return -(-a // b)


def _round_up(x: int, m: int) -> int:
    return ((x + m - 1) // m) * m


def gfm_kernel(u_ref, v_ref, wbd_ref, b_ref, o_ref):
    # u_ref, v_ref : (TBr, P*D) f32 in VMEM -- P samples packed per lane row
    # wbd_ref      : (P*D, P)   f32 in VMEM -- Linear weight, block-diagonal
    # b_ref        : (1, 1)     f32 in SMEM -- Linear bias (scalar)
    # o_ref        : (TBr, P)   f32 in VMEM -- per-sample probabilities
    prod = u_ref[...] * v_ref[...]                                # VPU
    logits = jnp.dot(prod, wbd_ref[...],                          # MXU reduce
                     preferred_element_type=jnp.float32,
                     precision=jax.lax.Precision.HIGHEST)
    o_ref[...] = jax.nn.sigmoid(logits + b_ref[0, 0])             # VPU + EUP


def gfm_forward(user_idx, item_idx, users_emb, items_emb, w, b,
                *, target_tile_rows=2048):
    """sigmoid(Linear(u * v)) over gathered user/item embedding rows -> (B,)."""
    B = int(user_idx.shape[0])
    D = int(users_emb.shape[1])

    users_emb = users_emb.astype(jnp.float32)
    items_emb = items_emb.astype(jnp.float32)
    w = jnp.asarray(w, jnp.float32).reshape(-1)            # (D,)
    b = jnp.asarray(b, jnp.float32).reshape(1, 1)          # (1, 1)

    # Pack P samples per 128-lane row (D=32 -> P=4): same bytes, 4x denser
    # vregs / VMEM tiles / DMAs.  Falls back to P=1 if D doesn't divide 128.
    P = 128 // D if (D <= 128 and 128 % D == 0) else 1
    PD = P * D

    rows = _cdiv(B, P)                                     # packed rows needed
    num_tiles = _cdiv(rows, target_tile_rows)
    tile_rows = _round_up(_cdiv(rows, num_tiles), 8)       # sublane granularity
    rows_pad = tile_rows * num_tiles
    B_pad = rows_pad * P

    if B_pad != B:                                         # tail padding
        user_idx = jnp.pad(user_idx, (0, B_pad - B))       # idx 0 is valid
        item_idx = jnp.pad(item_idx, (0, B_pad - B))

    # Embedding gather stays in XLA (see TODO(synk) at top of file).
    u = jnp.take(users_emb, user_idx, axis=0).reshape(rows_pad, PD)
    v = jnp.take(items_emb, item_idx, axis=0).reshape(rows_pad, PD)

    # Fold w into a block-diagonal (PD, P) matrix: column p carries w on the
    # rows of the p-th packed sample, so `prod @ w_bd` performs the
    # Linear(D, 1) reduction for all P packed samples at once.
    eye = jnp.eye(P, dtype=jnp.float32)                            # (P, P)
    w_bd = (w.reshape(1, D, 1) * eye.reshape(P, 1, P)).reshape(PD, P)

    out = pl.pallas_call(
        gfm_kernel,
        grid=(num_tiles,),
        out_shape=jax.ShapeDtypeStruct((rows_pad, P), jnp.float32),
        in_specs=[
            pl.BlockSpec((tile_rows, PD), lambda i: (i, 0)),       # u tile
            pl.BlockSpec((tile_rows, PD), lambda i: (i, 0)),       # v tile
            pl.BlockSpec((PD, P), lambda i: (0, 0)),               # w_bd (resident)
            pl.BlockSpec((1, 1), lambda i: (0, 0),
                         memory_space=pltpu.SMEM),                 # bias scalar
        ],
        out_specs=pl.BlockSpec((tile_rows, P), lambda i: (i, 0)),
        compiler_params=pltpu.CompilerParams(
            dimension_semantics=("parallel",)),
    )(u, v, w_bd, b)

    return out.reshape(-1)[:B]                              # (B,)


if __name__ == "__main__":
    # Module hyperparameters (small, consistent with GFM(n_users, n_items, dim))
    n_users, n_items, dim = 10, 12, 32
    batch = 8

    key = jax.random.PRNGKey(0)
    k_u, k_v, k_w, k_b, k_ui, k_ii = jax.random.split(key, 6)

    # Deterministic synthetic parameters (shapes match nn.Embedding / nn.Linear)
    users_emb = jax.random.normal(k_u, (n_users, dim), dtype=jnp.float32)
    items_emb = jax.random.normal(k_v, (n_items, dim), dtype=jnp.float32)
    w = jax.random.normal(k_w, (dim,), dtype=jnp.float32) * 0.1   # Linear.weight
    b = jax.random.normal(k_b, (1,), dtype=jnp.float32) * 0.1     # Linear.bias

    user_idx = jax.random.randint(k_ui, (batch,), 0, n_users, dtype=jnp.int32)
    item_idx = jax.random.randint(k_ii, (batch,), 0, n_items, dtype=jnp.int32)

    # jit the whole forward so the XLA gathers / pads / reshapes fuse around
    # the pallas_call and per-call dispatch overhead is paid once.
    gfm = jax.jit(gfm_forward)

    out = gfm(user_idx, item_idx, users_emb, items_emb, w, b)
    out = jax.block_until_ready(out)

    # Pure-JAX reference check
    u_ref = jnp.take(users_emb, user_idx, axis=0)
    v_ref = jnp.take(items_emb, item_idx, axis=0)
    ref = jax.nn.sigmoid((u_ref * v_ref) @ w + b[0])
    assert out.shape == (batch,)
    assert jnp.allclose(out, ref, atol=1e-4), (out, ref)

    print("KERNEL_OK")
</pallas_src>

<mosaic_0001>
module attributes {stable_mosaic.version = 11 : i64} {
  func.func @gfm_kernel(%arg0: i32, %arg1: memref<8x128xf32, #tpu.memory_space<vmem>>, %arg2: memref<8x128xf32, #tpu.memory_space<vmem>>, %arg3: memref<128x4xf32, #tpu.memory_space<vmem>>, %arg4: memref<1x1xf32, #tpu.memory_space<smem>>, %arg5: memref<8x4xf32, #tpu.memory_space<vmem>>) attributes {dimension_semantics = [#tpu.dimension_semantics<parallel>], iteration_bounds = array<i64: 1>, scalar_prefetch = 0 : i64, scratch_operands = 0 : i64, tpu.core_type = #tpu.core_type<tc>, window_params = [{transform_indices = @transform_0, window_bounds = array<i64: 8, 128>}, {transform_indices = @transform_1, window_bounds = array<i64: 8, 128>}, {pipeline_mode = #tpu.pipeline_mode<synchronous>, transform_indices = @transform_2, window_bounds = array<i64: 128, 4>}, {transform_indices = @transform_3, window_bounds = array<i64: 1, 1>}, {transform_indices = @transform_4, window_bounds = array<i64: 8, 4>}]} {
    %c0 = arith.constant 0 : index
    %c0_0 = arith.constant 0 : index
    %0 = vector.load %arg1[%c0, %c0_0] : memref<8x128xf32, #tpu.memory_space<vmem>>, vector<8x128xf32>
    %c0_1 = arith.constant 0 : index
    %c0_2 = arith.constant 0 : index
    %1 = vector.load %arg2[%c0_1, %c0_2] : memref<8x128xf32, #tpu.memory_space<vmem>>, vector<8x128xf32>
    %2 = arith.mulf %0, %1 : vector<8x128xf32>
    %c0_3 = arith.constant 0 : index
    %c0_4 = arith.constant 0 : index
    %3 = vector.load %arg3[%c0_3, %c0_4] : memref<128x4xf32, #tpu.memory_space<vmem>>, vector<128x4xf32>
    %cst = arith.constant dense<0.000000e+00> : vector<8x4xf32>
    %4 = tpu.matmul %2, %3, %cst {dimension_numbers = #tpu.dot_dimension_numbers<[1], [0], [0], [1], [0, 0, 1, 1], [], []>, precision = #tpu.contract_precision<fp32>} : vector<8x128xf32>, vector<128x4xf32>, vector<8x4xf32> -> vector<8x4xf32>
    %c0_5 = arith.constant 0 : index
    %c0_6 = arith.constant 0 : index
    %5 = memref.load %arg4[%c0_5, %c0_6] : memref<1x1xf32, #tpu.memory_space<smem>>
    %6 = vector.broadcast %5 : f32 to vector<8x4xf32>
    %7 = arith.addf %4, %6 : vector<8x4xf32>
    %8 = arith.negf %7 : vector<8x4xf32>
    %9 = math.exp %8 : vector<8x4xf32>
    %cst_7 = arith.constant 1.000000e+00 : f32
    %10 = vector.broadcast %cst_7 : f32 to vector<8x4xf32>
    %11 = arith.addf %10, %9 : vector<8x4xf32>
    %12 = arith.divf %10, %11 : vector<8x4xf32>
    %c0_8 = arith.constant 0 : index
    %c0_9 = arith.constant 0 : index
    %13 = vector.load %arg5[%c0_8, %c0_9] : memref<8x4xf32, #tpu.memory_space<vmem>>, vector<8x4xf32>
    tpu.vector_store %arg5[%c0_8, %c0_9], %12 {strides = array<i32>} : memref<8x4xf32, #tpu.memory_space<vmem>>, vector<8x4xf32>,
    return
  }
  func.func @transform_0(%arg0: i32) -> (i32, i32) {
    %c0_i32 = arith.constant 0 : i32
    %c0_i32_0 = arith.constant 0 : i32
    return %arg0, %c0_i32 : i32, i32
  }
  func.func @transform_1(%arg0: i32) -> (i32, i32) {
    %c0_i32 = arith.constant 0 : i32
    %c0_i32_0 = arith.constant 0 : i32
    return %arg0, %c0_i32 : i32, i32
  }
  func.func @transform_2(%arg0: i32) -> (i32, i32) {
    %c0_i32 = arith.constant 0 : i32
    %c0_i32_0 = arith.constant 0 : i32
    %c0_i32_1 = arith.constant 0 : i32
    return %c0_i32, %c0_i32_0 : i32, i32
  }
  func.func @transform_3(%arg0: i32) -> (i32, i32) {
    %c0_i32 = arith.constant 0 : i32
    %c0_i32_0 = arith.constant 0 : i32
    %c0_i32_1 = arith.constant 0 : i32
    return %c0_i32, %c0_i32_0 : i32, i32
  }
  func.func @transform_4(%arg0: i32) -> (i32, i32) {
    %c0_i32 = arith.constant 0 : i32
    %c0_i32_0 = arith.constant 0 : i32
    return %arg0, %c0_i32 : i32, i32
  }
}

</mosaic_0001>

<llo_original>
// kernel: gfm_forward.1
$region0: #{gfm_forward.1}
  #allocation0 [shape = 'u32[]', space=smem, size = 0x4, offset = 0x4, fixed_abs, tag = 'smem constant byte address 0x4 - core index']
  #allocation1 [shape = 'u32[72,128]{1,0:T(1,128)}', space=vmem, size = 0x9000, scoped, tag = 'internal scratch']
  #allocation2 [shape = 'f32[1,1]{1,0:T(1,128)S(6)}', space=smem, size = 0x200, scoped, tag = 'scoped memory for gfm_forward.1']
  %s0 = inlined_call_operand.vmem [shape: f32[8,128], index: 0, kind: input, shape index: {}]
  %s1 = inlined_call_operand.vmem [shape: f32[8,128], index: 1, kind: input, shape index: {}]
  %s2 = inlined_call_operand.vmem [shape: f32[128,4], index: 2, kind: input, shape index: {}]
  %s3 = inlined_call_operand.<no memory space> [shape: f32[1,1], index: 3, kind: input, shape index: {}]
  %s4 = inlined_call_operand.vmem [shape: f32[8,4], index: 4, kind: output, shape index: {}]
  %s5 = sld [smem:[#allocation0]]
  $region26: #{gfm_forward.1} parent=0
    _
  %s7 = ssub.s32 1, %s5
  %s8 = scalar_select 0, %s7, %s5
  %9 = sst [smem:[#allocation2]] %s3
  // Predicated region
  $region2: #{gfm_forward.1} parent=0 // pred_check
    _
  $region3: #{gfm_forward.1} parent=0 // pred_check_branch
    %11 = sbr.rel (0) target = $region5
  $region4: #{gfm_forward.1} parent=0 // pred_region
    _
  $region5: #{gfm_forward.1} parent=0 // pred_fallthru
    _
  // Predicated region
  $region6: #{gfm_forward.1} parent=0 // pred_check
    _
  $region7: #{gfm_forward.1} parent=0 // pred_check_branch
    %13 = sbr.rel (0) target = $region9
  $region8: #{gfm_forward.1} parent=0 // pred_region
    _
  $region9: #{gfm_forward.1} parent=0 // pred_fallthru
    _
  // Predicated region
  $region10: #{gfm_forward.1} parent=0 // pred_check
    _
  $region11: #{gfm_forward.1} parent=0 // pred_check_branch
    %15 = sbr.rel (0) target = $region13
  $region12: #{gfm_forward.1} parent=0 // pred_region
    _
  $region13: #{gfm_forward.1} parent=0 // pred_fallthru
    _
  // Predicated region
  $region14: #{gfm_forward.1} parent=0 // pred_check
    _
  $region15: #{gfm_forward.1} parent=0 // pred_check_branch
    %17 = sbr.rel (0) target = $region17
  $region16: #{gfm_forward.1} parent=0 // pred_region
    _
  $region17: #{gfm_forward.1} parent=0 // pred_fallthru
    _
  %v18 = vld [vmem:[%s0] sm:$0xff]
  %v19 = vld [vmem:[%s1] sm:$0xff]
  %v20 = vmul.f32 %v18, %v19
  %v21 = vld [vmem:[%s2] sm:$0xff]
  %v22 = vld [vmem:[%s2 + $0x8] sm:$0xff]
  %v23 = vld [vmem:[%s2 + $0x10] sm:$0xff]
  %v24 = vld [vmem:[%s2 + $0x18] sm:$0xff]
  %v25 = vld [vmem:[%s2 + $0x20] sm:$0xff]
  %v26 = vld [vmem:[%s2 + $0x28] sm:$0xff]
  %v27 = vld [vmem:[%s2 + $0x30] sm:$0xff]
  %v28 = vld [vmem:[%s2 + $0x38] sm:$0xff]
  %v29 = vld [vmem:[%s2 + $0x40] sm:$0xff]
  %v30 = vld [vmem:[%s2 + $0x48] sm:$0xff]
  %v31 = vld [vmem:[%s2 + $0x50] sm:$0xff]
  %v32 = vld [vmem:[%s2 + $0x58] sm:$0xff]
  %v33 = vld [vmem:[%s2 + $0x60] sm:$0xff]
  %v34 = vld [vmem:[%s2 + $0x68] sm:$0xff]
  %v35 = vld [vmem:[%s2 + $0x70] sm:$0xff]
  %v36 = vld [vmem:[%s2 + $0x78] sm:$0xff]
  %s37 = sld [smem:[#allocation2]]
  %v38 = vstv %s37
  %v39 = vand.u32 %v36, 4294901760
  %40 = vmatpush.msra.mxu0 %v39
  %v41 = vand.u32 %v35, 4294901760
  %42 = vmatpush.msra.mxu0 %v41
  %v43 = vand.u32 %v34, 4294901760
  %44 = vmatpush.msra.mxu0 %v43
  %v45 = vand.u32 %v33, 4294901760
  %46 = vmatpush.msra.mxu0 %v45
  %v47 = vand.u32 %v32, 4294901760
  %48 = vmatpush.msra.mxu0 %v47
  %v49 = vand.u32 %v31, 4294901760
  %50 = vmatpush.msra.mxu0 %v49
  %v51 = vand.u32 %v30, 4294901760
  %52 = vmatpush.msra.mxu0 %v51
  %v53 = vand.u32 %v29, 4294901760
  %54 = vmatpush.msra.mxu0 %v53
  %v55 = vand.u32 %v28, 4294901760
  %56 = vmatpush.msra.mxu0 %v55
  %v57 = vand.u32 %v27, 4294901760
  %58 = vmatpush.msra.mxu0 %v57
  %v59 = vand.u32 %v26, 4294901760
  %60 = vmatpush.msra.mxu0 %v59
  %v61 = vand.u32 %v25, 4294901760
  %62 = vmatpush.msra.mxu0 %v61
  %v63 = vand.u32 %v24, 4294901760
  %64 = vmatpush.msra.mxu0 %v63
  %v65 = vand.u32 %v23, 4294901760
  %66 = vmatpush.msra.mxu0 %v65
  %v67 = vand.u32 %v22, 4294901760
  %68 = vmatpush.msra.mxu0 %v67
  %v69 = vand.u32 %v21, 4294901760
  %70 = vmatpush.msra.mxu0 %v69
  %v71 = vand.u32 %v20, 4294901760
  %v72 = vsub.f32 %v20, %v71
  %v73 = vand.u32 %v72, 4294901760
  %v74 = vsub.f32 %v72, %v73
  %v75 = vand.u32 %v74, 4294901760
  %76 = vmatmul.f32.gmra.mxu0 %v75
  %v77 = vpop.f32.mrf.mxu0
  %v78 = vadd.f32 %v38, %v77
  %79 = vdwg.mxu0
  %v80 = vand.u32 %v36, 4294901760
  %v81 = vsub.f32 %v36, %v80
  %v82 = vand.u32 %v81, 4294901760
  %v83 = vsub.f32 %v81, %v82
  %v84 = vand.u32 %v83, 4294901760
  %85 = vmatpush.msra.mxu0 %v84
  %v86 = vand.u32 %v35, 4294901760
  %v87 = vsub.f32 %v35, %v86
  %v88 = vand.u32 %v87, 4294901760
  %v89 = vsub.f32 %v87, %v88
  %v90 = vand.u32 %v89, 4294901760
  %91 = vmatpush.msra.mxu0 %v90
  %v92 = vand.u32 %v34, 4294901760
  %v93 = vsub.f32 %v34, %v92
  %v94 = vand.u32 %v93, 4294901760
  %v95 = vsub.f32 %v93, %v94
  %v96 = vand.u32 %v95, 4294901760
  %97 = vmatpush.msra.mxu0 %v96
  %v98 = vand.u32 %v33, 4294901760
  %v99 = vsub.f32 %v33, %v98
  %v100 = vand.u32 %v99, 4294901760
  %v101 = vsub.f32 %v99, %v100
  %v102 = vand.u32 %v101, 4294901760
  %103 = vmatpush.msra.mxu0 %v102
  %v104 = vand.u32 %v32, 4294901760
  %v105 = vsub.f32 %v32, %v104
  %v106 = vand.u32 %v105, 4294901760
  %v107 = vsub.f32 %v105, %v106
  %v108 = vand.u32 %v107, 4294901760
  %109 = vmatpush.msra.mxu0 %v108
  %v110 = vand.u32 %v31, 4294901760
  %v111 = vsub.f32 %v31, %v110
  %v112 = vand.u32 %v111, 4294901760
  %v113 = vsub.f32 %v111, %v112
  %v114 = vand.u32 %v113, 4294901760
  %115 = vmatpush.msra.mxu0 %v114
  %v116 = vand.u32 %v30, 4294901760
  %v117 = vsub.f32 %v30, %v116
  %v118 = vand.u32 %v117, 4294901760
  %v119 = vsub.f32 %v117, %v118
  %v120 = vand.u32 %v119, 4294901760
  %121 = vmatpush.msra.mxu0 %v120
  %v122 = vand.u32 %v29, 4294901760
  %v123 = vsub.f32 %v29, %v122
  %v124 = vand.u32 %v123, 4294901760
  %v125 = vsub.f32 %v123, %v124
  %v126 = vand.u32 %v125, 4294901760
  %127 = vmatpush.msra.mxu0 %v126
  %v128 = vand.u32 %v28, 4294901760
  %v129 = vsub.f32 %v28, %v128
  %v130 = vand.u32 %v129, 4294901760
  %v131 = vsub.f32 %v129, %v130
  %v132 = vand.u32 %v131, 4294901760
  %133 = vmatpush.msra.mxu0 %v132
  %v134 = vand.u32 %v27, 4294901760
  %v135 = vsub.f32 %v27, %v134
  %v136 = vand.u32 %v135, 4294901760
  %v137 = vsub.f32 %v135, %v136
  %v138 = vand.u32 %v137, 4294901760
  %139 = vmatpush.msra.mxu0 %v138
  %v140 = vand.u32 %v26, 4294901760
  %v141 = vsub.f32 %v26, %v140
  %v142 = vand.u32 %v141, 4294901760
  %v143 = vsub.f32 %v141, %v142
  %v144 = vand.u32 %v143, 4294901760
  %145 = vmatpush.msra.mxu0 %v144
  %v146 = vand.u32 %v25, 4294901760
  %v147 = vsub.f32 %v25, %v146
  %v148 = vand.u32 %v147, 4294901760
  %v149 = vsub.f32 %v147, %v148
  %v150 = vand.u32 %v149, 4294901760
  %151 = vmatpush.msra.mxu0 %v150
  %v152 = vand.u32 %v24, 4294901760
  %v153 = vsub.f32 %v24, %v152
  %v154 = vand.u32 %v153, 4294901760
  %v155 = vsub.f32 %v153, %v154
  %v156 = vand.u32 %v155, 4294901760
  %157 = vmatpush.msra.mxu0 %v156
  %v158 = vand.u32 %v23, 4294901760
  %v159 = vsub.f32 %v23, %v158
  %v160 = vand.u32 %v159, 4294901760
  %v161 = vsub.f32 %v159, %v160
  %v162 = vand.u32 %v161, 4294901760
  %163 = vmatpush.msra.mxu0 %v162
  %v164 = vand.u32 %v22, 4294901760
  %v165 = vsub.f32 %v22, %v164
  %v166 = vand.u32 %v165, 4294901760
  %v167 = vsub.f32 %v165, %v166
  %v168 = vand.u32 %v167, 4294901760
  %169 = vmatpush.msra.mxu0 %v168
  %v170 = vand.u32 %v21, 4294901760
  %v171 = vsub.f32 %v21, %v170
  %v172 = vand.u32 %v171, 4294901760
  %v173 = vsub.f32 %v171, %v172
  %v174 = vand.u32 %v173, 4294901760
  %175 = vmatpush.msra.mxu0 %v174
  %v176 = vand.u32 %v20, 4294901760
  %177 = vmatmul.f32.gmra.mxu0 %v176
  %v178 = vpop.f32.mrf.mxu0
  %v179 = vadd.f32 %v78, %v178
  %180 = vdwg.mxu0
  %v181 = vand.u32 %v36, 4294901760
  %v182 = vsub.f32 %v36, %v181
  %183 = vmatpush.msra.mxu0 %v182
  %v184 = vand.u32 %v35, 4294901760
  %v185 = vsub.f32 %v35, %v184
  %186 = vmatpush.msra.mxu0 %v185
  %v187 = vand.u32 %v34, 4294901760
  %v188 = vsub.f32 %v34, %v187
  %189 = vmatpush.msra.mxu0 %v188
  %v190 = vand.u32 %v33, 4294901760
  %v191 = vsub.f32 %v33, %v190
  %192 = vmatpush.msra.mxu0 %v191
  %v193 = vand.u32 %v32, 4294901760
  %v194 = vsub.f32 %v32, %v193
  %195 = vmatpush.msra.mxu0 %v194
  %v196 = vand.u32 %v31, 4294901760
  %v197 = vsub.f32 %v31, %v196
  %198 = vmatpush.msra.mxu0 %v197
  %v199 = vand.u32 %v30, 4294901760
  %v200 = vsub.f32 %v30, %v199
  %201 = vmatpush.msra.mxu0 %v200
  %v202 = vand.u32 %v29, 4294901760
  %v203 = vsub.f32 %v29, %v202
  %204 = vmatpush.msra.mxu0 %v203
  %v205 = vand.u32 %v28, 4294901760
  %v206 = vsub.f32 %v28, %v205
  %207 = vmatpush.msra.mxu0 %v206
  %v208 = vand.u32 %v27, 4294901760
  %v209 = vsub.f32 %v27, %v208
  %210 = vmatpush.msra.mxu0 %v209
  %v211 = vand.u32 %v26, 4294901760
  %v212 = vsub.f32 %v26, %v211
  %213 = vmatpush.msra.mxu0 %v212
  %v214 = vand.u32 %v25, 4294901760
  %v215 = vsub.f32 %v25, %v214
  %216 = vmatpush.msra.mxu0 %v215
  %v217 = vand.u32 %v24, 4294901760
  %v218 = vsub.f32 %v24, %v217
  %219 = vmatpush.msra.mxu0 %v218
  %v220 = vand.u32 %v23, 4294901760
  %v221 = vsub.f32 %v23, %v220
  %222 = vmatpush.msra.mxu0 %v221
  %v223 = vand.u32 %v22, 4294901760
  %v224 = vsub.f32 %v22, %v223
  %225 = vmatpush.msra.mxu0 %v224
  %v226 = vand.u32 %v21, 4294901760
  %v227 = vsub.f32 %v21, %v226
  %228 = vmatpush.msra.mxu0 %v227
  %v229 = vand.u32 %v20, 4294901760
  %v230 = vsub.f32 %v20, %v229
  %231 = vmatmul.f32.gmra.mxu0 %v230
  %v232 = vpop.f32.mrf.mxu0
  %v233 = vadd.f32 %v179, %v232
  %234 = vdwg.mxu0
  %v235 = vand.u32 %v36, 4294901760
  %236 = vmatpush.msra.mxu0 %v235
  %v237 = vand.u32 %v35, 4294901760
  %238 = vmatpush.msra.mxu0 %v237
  %v239 = vand.u32 %v34, 4294901760
  %240 = vmatpush.msra.mxu0 %v239
  %v241 = vand.u32 %v33, 4294901760
  %242 = vmatpush.msra.mxu0 %v241
  %v243 = vand.u32 %v32, 4294901760
  %244 = vmatpush.msra.mxu0 %v243
  %v245 = vand.u32 %v31, 4294901760
  %246 = vmatpush.msra.mxu0 %v245
  %v247 = vand.u32 %v30, 4294901760
  %248 = vmatpush.msra.mxu0 %v247
  %v249 = vand.u32 %v29, 4294901760
  %250 = vmatpush.msra.mxu0 %v249
  %v251 = vand.u32 %v28, 4294901760
  %252 = vmatpush.msra.mxu0 %v251
  %v253 = vand.u32 %v27, 4294901760
  %254 = vmatpush.msra.mxu0 %v253
  %v255 = vand.u32 %v26, 4294901760
  %256 = vmatpush.msra.mxu0 %v255
  %v257 = vand.u32 %v25, 4294901760
  %258 = vmatpush.msra.mxu0 %v257
  %v259 = vand.u32 %v24, 4294901760
  %260 = vmatpush.msra.mxu0 %v259
  %v261 = vand.u32 %v23, 4294901760
  %262 = vmatpush.msra.mxu0 %v261
  %v263 = vand.u32 %v22, 4294901760
  %264 = vmatpush.msra.mxu0 %v263
  %v265 = vand.u32 %v21, 4294901760
  %266 = vmatpush.msra.mxu0 %v265
  %v267 = vand.u32 %v20, 4294901760
  %v268 = vsub.f32 %v20, %v267
  %v269 = vand.u32 %v268, 4294901760
  %270 = vmatmul.f32.gmra.mxu0 %v269
  %v271 = vpop.f32.mrf.mxu0
  %v272 = vadd.f32 %v233, %v271
  %273 = vdwg.mxu0
  %v274 = vand.u32 %v36, 4294901760
  %v275 = vsub.f32 %v36, %v274
  %v276 = vand.u32 %v275, 4294901760
  %277 = vmatpush.msra.mxu0 %v276
  %v278 = vand.u32 %v35, 4294901760
  %v279 = vsub.f32 %v35, %v278
  %v280 = vand.u32 %v279, 4294901760
  %281 = vmatpush.msra.mxu0 %v280
  %v282 = vand.u32 %v34, 4294901760
  %v283 = vsub.f32 %v34, %v282
  %v284 = vand.u32 %v283, 4294901760
  %285 = vmatpush.msra.mxu0 %v284
  %v286 = vand.u32 %v33, 4294901760
  %v287 = vsub.f32 %v33, %v286
  %v288 = vand.u32 %v287, 4294901760
  %289 = vmatpush.msra.mxu0 %v288
  %v290 = vand.u32 %v32, 4294901760
  %v291 = vsub.f32 %v32, %v290
  %v292 = vand.u32 %v291, 4294901760
  %293 = vmatpush.msra.mxu0 %v292
  %v294 = vand.u32 %v31, 4294901760
  %v295 = vsub.f32 %v31, %v294
  %v296 = vand.u32 %v295, 4294901760
  %297 = vmatpush.msra.mxu0 %v296
  %v298 = vand.u32 %v30, 4294901760
  %v299 = vsub.f32 %v30, %v298
  %v300 = vand.u32 %v299, 4294901760
  %301 = vmatpush.msra.mxu0 %v300
  %v302 = vand.u32 %v29, 4294901760
  %v303 = vsub.f32 %v29, %v302
  %v304 = vand.u32 %v303, 4294901760
  %305 = vmatpush.msra.mxu0 %v304
  %v306 = vand.u32 %v28, 4294901760
  %v307 = vsub.f32 %v28, %v306
  %v308 = vand.u32 %v307, 4294901760
  %309 = vmatpush.msra.mxu0 %v308
  %v310 = vand.u32 %v27, 4294901760
  %v311 = vsub.f32 %v27, %v310
  %v312 = vand.u32 %v311, 4294901760
  %313 = vmatpush.msra.mxu0 %v312
  %v314 = vand.u32 %v26, 4294901760
  %v315 = vsub.f32 %v26, %v314
  %v316 = vand.u32 %v315, 4294901760
  %317 = vmatpush.msra.mxu0 %v316
  %v318 = vand.u32 %v25, 4294901760
  %v319 = vsub.f32 %v25, %v318
  %v320 = vand.u32 %v319, 4294901760
  %321 = vmatpush.msra.mxu0 %v320
  %v322 = vand.u32 %v24, 4294901760
  %v323 = vsub.f32 %v24, %v322
  %v324 = vand.u32 %v323, 4294901760
  %325 = vmatpush.msra.mxu0 %v324
  %v326 = vand.u32 %v23, 4294901760
  %v327 = vsub.f32 %v23, %v326
  %v328 = vand.u32 %v327, 4294901760
  %329 = vmatpush.msra.mxu0 %v328
  %v330 = vand.u32 %v22, 4294901760
  %v331 = vsub.f32 %v22, %v330
  %v332 = vand.u32 %v331, 4294901760
  %333 = vmatpush.msra.mxu0 %v332
  %v334 = vand.u32 %v21, 4294901760
  %v335 = vsub.f32 %v21, %v334
  %v336 = vand.u32 %v335, 4294901760
  %337 = vmatpush.msra.mxu0 %v336
  %v338 = vand.u32 %v20, 4294901760
  %339 = vmatmul.f32.gmra.mxu0 %v338
  %v340 = vpop.f32.mrf.mxu0
  %v341 = vadd.f32 %v272, %v340
  %342 = vdwg.mxu0
  %v343 = vand.u32 %v36, 4294901760
  %344 = vmatpush.msra.mxu0 %v343
  %v345 = vand.u32 %v35, 4294901760
  %346 = vmatpush.msra.mxu0 %v345
  %v347 = vand.u32 %v34, 4294901760
  %348 = vmatpush.msra.mxu0 %v347
  %v349 = vand.u32 %v33, 4294901760
  %350 = vmatpush.msra.mxu0 %v349
  %v351 = vand.u32 %v32, 4294901760
  %352 = vmatpush.msra.mxu0 %v351
  %v353 = vand.u32 %v31, 4294901760
  %354 = vmatpush.msra.mxu0 %v353
  %v355 = vand.u32 %v30, 4294901760
  %356 = vmatpush.msra.mxu0 %v355
  %v357 = vand.u32 %v29, 4294901760
  %358 = vmatpush.msra.mxu0 %v357
  %v359 = vand.u32 %v28, 4294901760
  %360 = vmatpush.msra.mxu0 %v359
  %v361 = vand.u32 %v27, 4294901760
  %362 = vmatpush.msra.mxu0 %v361
  %v363 = vand.u32 %v26, 4294901760
  %364 = vmatpush.msra.mxu0 %v363
  %v365 = vand.u32 %v25, 4294901760
  %366 = vmatpush.msra.mxu0 %v365
  %v367 = vand.u32 %v24, 4294901760
  %368 = vmatpush.msra.mxu0 %v367
  %v369 = vand.u32 %v23, 4294901760
  %370 = vmatpush.msra.mxu0 %v369
  %v371 = vand.u32 %v22, 4294901760
  %372 = vmatpush.msra.mxu0 %v371
  %v373 = vand.u32 %v21, 4294901760
  %374 = vmatpush.msra.mxu0 %v373
  %v375 = vand.u32 %v20, 4294901760
  %376 = vmatmul.f32.gmra.mxu0 %v375
  %v377 = vpop.f32.mrf.mxu0
  %v378 = vadd.f32 %v341, %v377
  %379 = vdwg.mxu0
  %v380 = vxor.u32 %v378, 2147483648
  %v381 = vmul.f32 %v380, 1.442695
  %v382 = vpow.pop %v381
  %v383 = vadd.f32 %v382, 1.0
  %v384 = vrcp.pop %v383
  %v385 = vmul.f32 %v383, %v384
  %v386 = vsub.f32 1.0, %v385
  %v387 = vmul.f32 %v384, %v386
  %v388 = vadd.f32 %v384, %v387
  %vm389 = vweird.f32 %v383
  %vm390 = vweird.f32 %v384
  %vm391 = vmor %vm389, %vm390
  %v392 = vsel %vm391, %v384, %v388
  %v393 = vand.u32 2147483647, %v383
  %vm394 = vcmp.eq.f32.partialorder %v393, 8.507059e+37
  %v395 = vand.u32 %v383, 2147483648
  %v396 = vor.u32 1.1754944e-38, %v395
  %v397 = vsel %vm394, %v396, %v392
  %v398 = vmul.f32 1.0, %v397
  %vm399 = vcmask 31744
  %400 = vst.msk [vmem:[%s4] sm:$0xff] %vm399, %v398
  // Predicated region
  $region18: #{gfm_forward.1} parent=0 // pred_check
    _
  $region19: #{gfm_forward.1} parent=0 // pred_check_branch
    %402 = sbr.rel (0) target = $region21
  $region20: #{gfm_forward.1} parent=0 // pred_region
    _
  $region21: #{gfm_forward.1} parent=0 // pred_fallthru
    _
  // Predicated region
  $region22: #{gfm_forward.1} parent=0 // pred_check
    _
  $region23: #{gfm_forward.1} parent=0 // pred_check_branch
    %404 = sbr.rel (0) target = $region25
  $region24: #{gfm_forward.1} parent=0 // pred_region
    _
  $region25: #{gfm_forward.1} parent=0 // pred_fallthru
    _

</llo_original>
